<compile_context>
chip_gen: v7x
topology: tpu7x:2x2x1
jax: 0.10.0
libtpu: 0.0.40
codegen_flags: <defaults>
</compile_context>

<pallas_src>
import functools

import jax
import jax.numpy as jnp
from jax.experimental import pallas as pl
from jax.experimental.pallas import tpu as pltpu


# --------------------------------------------------------------------------- #
# Kernels
# --------------------------------------------------------------------------- #

def _perm_equi2_mean_fullset_kernel(x_ref, gw_ref, gb_ref, lw_ref, o_ref, xm_ref):
    # x_ref : (BB, N, D_in)      full set resident
    # gw_ref: (D_in, TDO)        Gamma weight column tile
    # gb_ref: (1, TDO)           Gamma bias column tile (f32)
    # lw_ref: (D_in, TDO)        Lambda weight column tile
    # o_ref : (BB, N, TDO)
    # xm_ref: VMEM scratch (BB, D_in) — set mean, persists across the j axis
    bb, n, d_in = x_ref.shape

    # Compute the set mean only once per batch block (j == 0), reuse for j > 0.
    # f32-accumulating reduction, no explicit f32 copy of the whole tile.
    @pl.when(pl.program_id(1) == 0)
    def _():
        xm_ref[...] = (jnp.sum(x_ref[...], axis=1, dtype=jnp.float32)
                       * (1.0 / n)).astype(xm_ref.dtype)

    # Gamma(x): one (BB*N, D_in) @ (D_in, TDO) MXU matmul, f32 accumulate.
    x2d = x_ref[...].reshape(bb * n, d_in)
    gamma = jnp.dot(x2d, gw_ref[...], preferred_element_type=jnp.float32)
    # Lambda(mean(x)): tiny M=BB matmul.
    lam = jnp.dot(xm_ref[...], lw_ref[...], preferred_element_type=jnp.float32)

    out = (gamma.reshape(bb, n, -1)
           + gb_ref[...].astype(jnp.float32)      # (1, TDO) broadcast
           - lam[:, None, :])                     # (BB, 1, TDO) broadcast
    o_ref[...] = out.astype(o_ref.dtype)


def _perm_equi2_mean_ntiled_kernel(x_ref, xm_ref, gw_ref, gb_ref, lw_ref, o_ref):
    # Large-set path: the set axis is tiled; the set mean is precomputed.
    # x_ref : (1, TN, D_in)
    # xm_ref: (1, 1, D_in)       precomputed set mean for this batch element
    # gw_ref: (D_in, TDO), gb_ref: (1, TDO), lw_ref: (D_in, TDO)
    # o_ref : (1, TN, TDO)
    _, tn, d_in = x_ref.shape
    x2d = x_ref[...].reshape(tn, d_in)
    gamma = jnp.dot(x2d, gw_ref[...], preferred_element_type=jnp.float32)
    lam = jnp.dot(xm_ref[...].reshape(1, d_in), lw_ref[...],
                  preferred_element_type=jnp.float32)          # (1, TDO)
    out = gamma + gb_ref[...].astype(jnp.float32) - lam
    o_ref[...] = out.reshape(1, tn, -1).astype(o_ref.dtype)


# --------------------------------------------------------------------------- #
# Wrapper helpers
# --------------------------------------------------------------------------- #

def _round_up(v, m):
    return (v + m - 1) // m * m


_VMEM_BUDGET_CACHE = None


def _vmem_budget_bytes():
    """~3/4 of physical VMEM (≈96 MiB on v5e/v6e, ≈48 MiB on v7x)."""
    global _VMEM_BUDGET_CACHE
    if _VMEM_BUDGET_CACHE is None:
        phys = 64 * 1024 * 1024                     # conservative fallback (v7x)
        try:
            phys = int(getattr(pltpu.get_tpu_info(), "vmem_capacity_bytes", phys))
        except Exception:
            pass
        _VMEM_BUDGET_CACHE = (phys // 4) * 3
    return _VMEM_BUDGET_CACHE


def _choose_tdo(d_out_p, d_in, bpe, budget):
    """Prefer the whole padded D_out resident (weights fetched once);
    fall back to the largest 128-multiple divisor that fits the budget."""
    def w_bytes(t):
        return 2 * 2 * d_in * t * bpe               # 2 matrices x double buffer
    if w_bytes(d_out_p) <= budget // 2:
        return d_out_p
    for t in range(d_out_p // 128, 0, -1):
        cand = t * 128
        if d_out_p % cand == 0 and w_bytes(cand) <= budget // 2:
            return cand
    return 128


# --------------------------------------------------------------------------- #
# Public entry point
# --------------------------------------------------------------------------- #

@functools.partial(jax.jit,
                   static_argnames=("compute_dtype", "set_block_rows", "n_block"))
def perm_equi2_mean(x, gamma_w, gamma_b, lambda_w, *,
                    compute_dtype=None, set_block_rows=1024, n_block=None):
    """PermEqui2_mean forward.

    x        : (B, N, D_in)
    gamma_w  : (D_in, D_out)   (transposed w.r.t. nn.Linear.weight)
    gamma_b  : (D_out,) or (1, D_out)
    lambda_w : (D_in, D_out)
    compute_dtype : matmul operand dtype. Default keeps the input dtype
                    (bit-exact vs. the f32 reference); pass jnp.bfloat16 on
                    v6e/v7x for the MXU-native / half-traffic path.
    n_block  : optional forced set-axis tile (multiple of 8) — mainly for tests.
    """
    B, N, D_in = x.shape
    D_out = gamma_w.shape[1]
    out_dtype = x.dtype
    cdt = jnp.dtype(compute_dtype) if compute_dtype is not None else jnp.dtype(x.dtype)
    bpe = cdt.itemsize
    obpe = jnp.dtype(out_dtype).itemsize

    budget = _vmem_budget_bytes()

    # --- lane-dense OUTPUT feature axis only (x keeps its true D_in) ---------
    D_out_p = _round_up(D_out, 128)
    TDO = _choose_tdo(D_out_p, D_in, bpe, budget)
    n_j = D_out_p // TDO

    # Weights / bias: cast, pad only the D_out axis when needed (tiny arrays).
    gw = gamma_w.astype(cdt)
    lw = lambda_w.astype(cdt)
    gb = gamma_b.reshape(1, D_out).astype(jnp.float32)
    if D_out_p != D_out:
        gw = jnp.zeros((D_in, D_out_p), cdt).at[:, :D_out].set(gw)
        lw = jnp.zeros((D_in, D_out_p), cdt).at[:, :D_out].set(lw)
        gb = jnp.zeros((1, D_out_p), jnp.float32).at[:, :D_out].set(gb)

    # x: no padding; cast only if a different compute dtype is requested.
    xc = x if cdt == jnp.dtype(x.dtype) else x.astype(cdt)

    # --- VMEM accounting (double-buffered tiles + f32 epilogue temporaries) --
    w_bytes = 2 * 2 * D_in * TDO * bpe + 2 * TDO * 4
    avail = max(0, budget - w_bytes)
    per_row = D_in * bpe * 2 + TDO * obpe * 2 + TDO * 4 * 2
    per_b = N * per_row + D_in * 4 * 2              # + tiny xm scratch

    force_ntile = (n_block is not None) and (n_block < N)
    fits_full_set = per_b <= avail

    if fits_full_set and not force_ntile:
        # ------------------- Path A: whole set resident ----------------------
        bb_cap = min(B,
                     max(1, set_block_rows // max(N, 1)),
                     max(1, avail // per_b))
        if B >= 2:                                  # >=2 grid steps -> both v7x TCs
            bb_cap = min(bb_cap, max(1, B // 2))
        BB = 1
        for d in range(bb_cap, 0, -1):              # divisor of B -> no batch padding
            if B % d == 0:
                BB = d
                break

        grid = (B // BB, n_j)
        out = pl.pallas_call(
            _perm_equi2_mean_fullset_kernel,
            out_shape=jax.ShapeDtypeStruct((B, N, D_out_p), out_dtype),
            grid_spec=pltpu.PrefetchScalarGridSpec(
                num_scalar_prefetch=0,
                grid=grid,
                in_specs=[
                    pl.BlockSpec((BB, N, D_in), lambda b, j: (b, 0, 0)),   # x
                    pl.BlockSpec((D_in, TDO), lambda b, j: (0, j)),        # Gamma W
                    pl.BlockSpec((1, TDO), lambda b, j: (0, j)),           # Gamma b
                    pl.BlockSpec((D_in, TDO), lambda b, j: (0, j)),        # Lambda W
                ],
                out_specs=pl.BlockSpec((BB, N, TDO), lambda b, j: (b, 0, j)),
                scratch_shapes=[pltpu.VMEM((BB, D_in), cdt)],              # set mean
            ),
            # j is "arbitrary": the xm scratch is reused across D_out tiles.
            compiler_params=pltpu.CompilerParams(
                dimension_semantics=("parallel", "arbitrary"),
                vmem_limit_bytes=int(budget),
            ),
        )(xc, gw, gb, lw)
        N_out = N
    else:
        # ------------- Path B: large sets — tile the set axis ----------------
        # Set mean precomputed with one XLA pass over x (unavoidable once the
        # whole set no longer fits VMEM).
        if force_ntile:
            TN = max(8, (n_block // 8) * 8)
        else:
            tn_cap = max(8, ((avail // max(per_row, 1)) // 8) * 8)
            TN = min(tn_cap, max(8, _round_up(set_block_rows, 8)))
        TN = min(TN, _round_up(N, 8))
        N_p = _round_up(N, TN)

        xm = jnp.mean(x, axis=1, dtype=jnp.float32).astype(cdt).reshape(B, 1, D_in)
        if N_p != N:
            # TODO(synk): ragged last set block is handled by zero-padding N,
            # which costs one extra pass over x; a masked last-block kernel
            # would avoid it.
            xc = jnp.zeros((B, N_p, D_in), cdt).at[:, :N, :].set(xc)

        grid = (B, n_j, N_p // TN)                  # n innermost: x streams,
        out = pl.pallas_call(                       # weights swap only with j
            _perm_equi2_mean_ntiled_kernel,
            out_shape=jax.ShapeDtypeStruct((B, N_p, D_out_p), out_dtype),
            grid_spec=pltpu.PrefetchScalarGridSpec(
                num_scalar_prefetch=0,
                grid=grid,
                in_specs=[
                    pl.BlockSpec((1, TN, D_in), lambda b, j, n: (b, n, 0)),  # x
                    pl.BlockSpec((1, 1, D_in), lambda b, j, n: (b, 0, 0)),   # mean
                    pl.BlockSpec((D_in, TDO), lambda b, j, n: (0, j)),       # Gamma W
                    pl.BlockSpec((1, TDO), lambda b, j, n: (0, j)),          # Gamma b
                    pl.BlockSpec((D_in, TDO), lambda b, j, n: (0, j)),       # Lambda W
                ],
                out_specs=pl.BlockSpec((1, TN, TDO), lambda b, j, n: (b, n, j)),
            ),
            compiler_params=pltpu.CompilerParams(
                dimension_semantics=("parallel", "parallel", "arbitrary"),
                vmem_limit_bytes=int(budget),
            ),
        )(xc, xm, gw, gb, lw)
        N_out = N_p

    # Slice off padding only when padding was actually introduced.
    if D_out_p != D_out or N_out != N:
        out = out[:, :N, :D_out]
    return out


def perm_equi2_mean_ref(x, gamma_w, gamma_b, lambda_w):
    xm = jnp.mean(x, axis=1, keepdims=True)
    return (x @ gamma_w + gamma_b.reshape(1, -1)) - (xm @ lambda_w)


if __name__ == "__main__":
    B, N, D_in, D_out = 2, 16, 16, 32
    key = jax.random.PRNGKey(0)
    kx, kgw, kgb, klw = jax.random.split(key, 4)

    # Deterministic init (mimics nn.Linear's U(-1/sqrt(in), 1/sqrt(in)))
    bound = 1.0 / (D_in ** 0.5)
    x = jax.random.normal(kx, (B, N, D_in), dtype=jnp.float32)
    gamma_w = jax.random.uniform(kgw, (D_in, D_out), jnp.float32, -bound, bound)
    gamma_b = jax.random.uniform(kgb, (1, D_out), jnp.float32, -bound, bound)
    lambda_w = jax.random.uniform(klw, (D_in, D_out), jnp.float32, -bound, bound)

    ref = perm_equi2_mean_ref(x, gamma_w, gamma_b, lambda_w)

    # Path A (whole set resident), f32 compute — bit-tight vs. reference.
    out_a = jax.block_until_ready(perm_equi2_mean(x, gamma_w, gamma_b, lambda_w))
    assert out_a.shape == (B, N, D_out)
    assert jnp.allclose(out_a, ref, atol=1e-5, rtol=1e-5)

    # Path B (set-axis tiling forced), f32 compute.
    out_b = jax.block_until_ready(
        perm_equi2_mean(x, gamma_w, gamma_b, lambda_w, n_block=8))
    assert out_b.shape == (B, N, D_out)
    assert jnp.allclose(out_b, ref, atol=1e-5, rtol=1e-5)

    # bf16 MXU-operand path (recommended on v6e/v7x) — bf16-level tolerance.
    out_c = jax.block_until_ready(
        perm_equi2_mean(x, gamma_w, gamma_b, lambda_w, compute_dtype=jnp.bfloat16))
    assert out_c.shape == (B, N, D_out)
    assert jnp.allclose(out_c, ref, atol=5e-2, rtol=5e-2)

    print("KERNEL_OK")
</pallas_src>

<mosaic_0001>
module attributes {stable_mosaic.version = 11 : i64} {
  func.func @_perm_equi2_mean_fullset_kernel(%arg0: i32, %arg1: i32, %arg2: memref<1x16x16xf32, #tpu.memory_space<vmem>>, %arg3: memref<16x128xf32, #tpu.memory_space<vmem>>, %arg4: memref<1x128xf32, #tpu.memory_space<vmem>>, %arg5: memref<16x128xf32, #tpu.memory_space<vmem>>, %arg6: memref<1x16x128xf32, #tpu.memory_space<vmem>>, %arg7: memref<1x16xf32, #tpu.memory_space<vmem>>) attributes {dimension_semantics = [#tpu.dimension_semantics<parallel>, #tpu.dimension_semantics<arbitrary>], iteration_bounds = array<i64: 2, 1>, scalar_prefetch = 0 : i64, scratch_operands = 1 : i64, tpu.core_type = #tpu.core_type<tc>, window_params = [{transform_indices = @transform_0, window_bounds = array<i64: 1, 16, 16>}, {transform_indices = @transform_1, window_bounds = array<i64: 16, 128>}, {transform_indices = @transform_2, window_bounds = array<i64: 1, 128>}, {transform_indices = @transform_3, window_bounds = array<i64: 16, 128>}, {transform_indices = @transform_4, window_bounds = array<i64: 1, 16, 128>}]} {
    %c0_i32 = arith.constant 0 : i32
    %0 = arith.cmpi eq, %arg1, %c0_i32 : i32
    %1 = arith.extui %0 : i1 to i32
    %c0_i32_0 = arith.constant 0 : i32
    %2 = arith.cmpi ne, %1, %c0_i32_0 : i32
    scf.if %2 {
      %c0_15 = arith.constant 0 : index
      %c0_16 = arith.constant 0 : index
      %c0_17 = arith.constant 0 : index
      %19 = vector.load %arg2[%c0_15, %c0_16, %c0_17] : memref<1x16x16xf32, #tpu.memory_space<vmem>>, vector<1x16x16xf32>
      %cst_18 = arith.constant dense<0.000000e+00> : vector<1x16xf32>
      %20 = vector.multi_reduction <add>, %19, %cst_18 [1] : vector<1x16x16xf32> to vector<1x16xf32>
      %cst_19 = arith.constant 6.250000e-02 : f32
      %21 = vector.broadcast %cst_19 : f32 to vector<1x16xf32>
      %22 = arith.mulf %20, %21 : vector<1x16xf32>
      %c0_20 = arith.constant 0 : index
      %c0_21 = arith.constant 0 : index
      %23 = vector.load %arg7[%c0_20, %c0_21] : memref<1x16xf32, #tpu.memory_space<vmem>>, vector<1x16xf32>
      tpu.vector_store %arg7[%c0_20, %c0_21], %22 {strides = array<i32>} : memref<1x16xf32, #tpu.memory_space<vmem>>, vector<1x16xf32>,
    } else {
    }
    %c0 = arith.constant 0 : index
    %c0_1 = arith.constant 0 : index
    %c0_2 = arith.constant 0 : index
    %3 = vector.load %arg2[%c0, %c0_1, %c0_2] : memref<1x16x16xf32, #tpu.memory_space<vmem>>, vector<1x16x16xf32>
    %4 = vector.shape_cast %3 : vector<1x16x16xf32> to vector<16x16xf32>
    %c0_3 = arith.constant 0 : index
    %c0_4 = arith.constant 0 : index
    %5 = vector.load %arg3[%c0_3, %c0_4] : memref<16x128xf32, #tpu.memory_space<vmem>>, vector<16x128xf32>
    %cst = arith.constant dense<0.000000e+00> : vector<16x128xf32>
    %6 = tpu.matmul %4, %5, %cst {dimension_numbers = #tpu.dot_dimension_numbers<[1], [0], [0], [1], [0, 0, 1, 1], [], []>} : vector<16x16xf32>, vector<16x128xf32>, vector<16x128xf32> -> vector<16x128xf32>
    %c0_5 = arith.constant 0 : index
    %c0_6 = arith.constant 0 : index
    %7 = vector.load %arg7[%c0_5, %c0_6] : memref<1x16xf32, #tpu.memory_space<vmem>>, vector<1x16xf32>
    %c0_7 = arith.constant 0 : index
    %c0_8 = arith.constant 0 : index
    %8 = vector.load %arg5[%c0_7, %c0_8] : memref<16x128xf32, #tpu.memory_space<vmem>>, vector<16x128xf32>
    %cst_9 = arith.constant dense<0.000000e+00> : vector<1x128xf32>
    %9 = tpu.matmul %7, %8, %cst_9 {dimension_numbers = #tpu.dot_dimension_numbers<[1], [0], [0], [1], [0, 0, 1, 1], [], []>} : vector<1x16xf32>, vector<16x128xf32>, vector<1x128xf32> -> vector<1x128xf32>
    %10 = vector.shape_cast %6 : vector<16x128xf32> to vector<1x16x128xf32>
    %c0_10 = arith.constant 0 : index
    %c0_11 = arith.constant 0 : index
    %11 = vector.load %arg4[%c0_10, %c0_11] : memref<1x128xf32, #tpu.memory_space<vmem>>, vector<1x128xf32>
    %12 = vector.shape_cast %11 : vector<1x128xf32> to vector<1x1x128xf32>
    %13 = vector.broadcast %12 : vector<1x1x128xf32> to vector<1x16x128xf32>
    %14 = arith.addf %10, %13 : vector<1x16x128xf32>
    %15 = vector.shape_cast %9 : vector<1x128xf32> to vector<1x1x128xf32>
    %16 = vector.broadcast %15 : vector<1x1x128xf32> to vector<1x16x128xf32>
    %17 = arith.subf %14, %16 : vector<1x16x128xf32>
    %c0_12 = arith.constant 0 : index
    %c0_13 = arith.constant 0 : index
    %c0_14 = arith.constant 0 : index
    %18 = vector.load %arg6[%c0_12, %c0_13, %c0_14] : memref<1x16x128xf32, #tpu.memory_space<vmem>>, vector<1x16x128xf32>
    tpu.vector_store %arg6[%c0_12, %c0_13, %c0_14], %17 {strides = array<i32>} : memref<1x16x128xf32, #tpu.memory_space<vmem>>, vector<1x16x128xf32>,
    return
  }
  func.func @transform_0(%arg0: i32, %arg1: i32) -> (i32, i32, i32) {
    %c0_i32 = arith.constant 0 : i32
    %c0_i32_0 = arith.constant 0 : i32
    %c0_i32_1 = arith.constant 0 : i32
    return %arg0, %c0_i32, %c0_i32_0 : i32, i32, i32
  }
  func.func @transform_1(%arg0: i32, %arg1: i32) -> (i32, i32) {
    %c0_i32 = arith.constant 0 : i32
    %c0_i32_0 = arith.constant 0 : i32
    return %c0_i32, %arg1 : i32, i32
  }
  func.func @transform_2(%arg0: i32, %arg1: i32) -> (i32, i32) {
    %c0_i32 = arith.constant 0 : i32
    %c0_i32_0 = arith.constant 0 : i32
    return %c0_i32, %arg1 : i32, i32
  }
  func.func @transform_3(%arg0: i32, %arg1: i32) -> (i32, i32) {
    %c0_i32 = arith.constant 0 : i32
    %c0_i32_0 = arith.constant 0 : i32
    return %c0_i32, %arg1 : i32, i32
  }
  func.func @transform_4(%arg0: i32, %arg1: i32) -> (i32, i32, i32) {
    %c0_i32 = arith.constant 0 : i32
    %c0_i32_0 = arith.constant 0 : i32
    return %arg0, %c0_i32, %arg1 : i32, i32, i32
  }
}

</mosaic_0001>

<llo_original>
// kernel: perm_equi2_mean.1
$region0: #{perm_equi2_mean.1}
  #allocation0 [shape = 'u32[]', space=smem, size = 0x4, offset = 0x4, fixed_abs, tag = 'smem constant byte address 0x4 - core index']
  #allocation1 [shape = 'u32[144,128]{1,0:T(1,128)}', space=vmem, size = 0x12000, scoped, tag = 'internal scratch']
  #allocation2 [shape = 'f32[1,16]{1,0:T(1,128)}', space=vmem, size = 0x200, scoped, tag = 'scratch operand']
  %s0 = inlined_call_operand.vmem [shape: f32[2,16,16], index: 0, kind: input, shape index: {}]
  %s1 = inlined_call_operand.vmem [shape: f32[16,128], index: 1, kind: input, shape index: {}]
  %s2 = inlined_call_operand.vmem [shape: f32[1,128], index: 2, kind: input, shape index: {}]
  %s3 = inlined_call_operand.vmem [shape: f32[16,128], index: 3, kind: input, shape index: {}]
  %s4 = inlined_call_operand.hbm [shape: f32[2,16,128], index: 4, kind: output, shape index: {}]
  %s5 = sld [smem:[#allocation0]]
  $region53: #{perm_equi2_mean.1} parent=0
    _
  %s7 = ssub.s32 1, %s5
  %s8 = scalar_select 0, %s7, %s5
  $region1: #{perm_equi2_mean.1} parent=0
    #allocation3 [shape = 'u8[16384]{0}', space=vmem, size = 0x4000, scoped, tag = 'output window, operand 0']
    #allocation4 [shape = 's32[2]{0}', space=sflag, size = 0x8, scoped, tag = 'scoped memory for perm_equi2_mean.1']
    %9 = vsyncpa [#allocation4], 0
    %s10 = scalar_lea.sflag [#allocation4], 1
    %11 = vsyncpa %s10, 0
    loop: start=0, step=1, limit=4
    $region2: #{perm_equi2_mean.1} parent=1 // loop_pre_header
      _
    $region3: #{perm_equi2_mean.1} parent=1 // loop_header
      %s13 = sphi 0, %s17
      %p14 = scmp.ge.s32.totalorder %s13, 4
      %s20 = sphi 0, %s32
      %s21 = sphi 0, %s28
      %s22 = sphi 0, %s20
      %s23 = sphi 0, %s21
      %s24 = sphi 0, %s22
      %s25 = sphi 0, %s23
      %s35 = sphi 0, %s37
      %s38 = sphi 0, %s35
      %s39 = sphi 0, %s38
      %s55 = sphi 0, %s39
      %s61 = sphi 0, %s63
      %s64 = sphi 0, %s61
      %s65 = sphi 0, %s64
      %s81 = sphi 0, %s65
      %s87 = sphi 0, %s89
      %s90 = sphi 0, %s87
      %s91 = sphi 0, %s90
      %s107 = sphi 0, %s91
      %s113 = sphi 0, %s115
      %s116 = sphi 0, %s113
      %s117 = sphi 0, %s116
      %s133 = sphi 0, %s117
      %s141 = sphi 0, %s143
      %s144 = sphi 0, %s141
      %s145 = sphi 0, %s144
      %s161 = sphi 0, %s145
    $region4: #{perm_equi2_mean.1} parent=1 // loop_header_branch
      %16 = sbr.rel (%p14) target = $region8
    $region5: #{perm_equi2_mean.1} parent=1 // loop_body
      %s18 = ssub.s32 %s13, 1
      %s19 = ssub.s32 %s13, 2
      %s26 = sadd.s32 1, %s21
      %p27 = scmp.ge.s32.totalorder %s26, 1
      %s28 = scalar_select %p27, 0, %s26
      %s29 = sadd.s32 1, %s20
      %s30 = scalar_select %p27, %s29, %s20
      %p31 = scmp.ge.s32.totalorder %s30, 2
      %s32 = scalar_select %p31, 0, %s30
      %s33 = ssub.s32 %s20, %s32
      %p34 = scmp.eq.s32.totalorder %s33, 0
      %s36 = sadd.s32 %s35, 1
      %s37 = scalar_select %p34, %s35, %s36
      %p40 = pneg %p34
      %p41 = scmp.eq.s32.totalorder %s13, 1
      %p42 = por %p40, %p41
      %p43 = scmp.ne.s32.totalorder %s35, %s38
      %p44 = scmp.eq.s32.totalorder %s13, 0
      %p45 = por %p43, %p44
      %p46 = scmp.ne.s32.totalorder %s35, %s38
      %p47 = scmp.eq.s32.totalorder %s18, 1
      %p48 = por %p46, %p47
      %p49 = scmp.ne.s32.totalorder %s38, %s39
      %p50 = scmp.eq.s32.totalorder %s18, 0
      %p51 = por %p49, %p50
      %p52 = scmp.ne.s32.totalorder %s38, %s39
      %p53 = scmp.eq.s32.totalorder %s19, 1
      %p54 = por %p52, %p53
      %p56 = scmp.ne.s32.totalorder %s39, %s55
      %p57 = scmp.eq.s32.totalorder %s19, 0
      %p58 = por %p56, %p57
      %s59 = ssub.s32 %s21, %s28
      %p60 = scmp.eq.s32.totalorder %s59, 0
      %s62 = sadd.s32 %s61, 1
      %s63 = scalar_select %p60, %s61, %s62
      %p66 = pneg %p60
      %p67 = scmp.eq.s32.totalorder %s13, 1
      %p68 = por %p66, %p67
      %p69 = scmp.ne.s32.totalorder %s61, %s64
      %p70 = scmp.eq.s32.totalorder %s13, 0
      %p71 = por %p69, %p70
      %p72 = scmp.ne.s32.totalorder %s61, %s64
      %p73 = scmp.eq.s32.totalorder %s18, 1
      %p74 = por %p72, %p73
      %p75 = scmp.ne.s32.totalorder %s64, %s65
      %p76 = scmp.eq.s32.totalorder %s18, 0
      %p77 = por %p75, %p76
      %p78 = scmp.ne.s32.totalorder %s64, %s65
      %p79 = scmp.eq.s32.totalorder %s19, 1
      %p80 = por %p78, %p79
      %p82 = scmp.ne.s32.totalorder %s65, %s81
      %p83 = scmp.eq.s32.totalorder %s19, 0
      %p84 = por %p82, %p83
      %s85 = ssub.s32 %s21, %s28
      %p86 = scmp.eq.s32.totalorder %s85, 0
      %s88 = sadd.s32 %s87, 1
      %s89 = scalar_select %p86, %s87, %s88
      %p92 = pneg %p86
      %p93 = scmp.eq.s32.totalorder %s13, 1
      %p94 = por %p92, %p93
      %p95 = scmp.ne.s32.totalorder %s87, %s90
      %p96 = scmp.eq.s32.totalorder %s13, 0
      %p97 = por %p95, %p96
      %p98 = scmp.ne.s32.totalorder %s87, %s90
      %p99 = scmp.eq.s32.totalorder %s18, 1
      %p100 = por %p98, %p99
      %p101 = scmp.ne.s32.totalorder %s90, %s91
      %p102 = scmp.eq.s32.totalorder %s18, 0
      %p103 = por %p101, %p102
      %p104 = scmp.ne.s32.totalorder %s90, %s91
      %p105 = scmp.eq.s32.totalorder %s19, 1
      %p106 = por %p104, %p105
      %p108 = scmp.ne.s32.totalorder %s91, %s107
      %p109 = scmp.eq.s32.totalorder %s19, 0
      %p110 = por %p108, %p109
      %s111 = ssub.s32 %s21, %s28
      %p112 = scmp.eq.s32.totalorder %s111, 0
      %s114 = sadd.s32 %s113, 1
      %s115 = scalar_select %p112, %s113, %s114
      %p118 = pneg %p112
      %p119 = scmp.eq.s32.totalorder %s13, 1
      %p120 = por %p118, %p119
      %p121 = scmp.ne.s32.totalorder %s113, %s116
      %p122 = scmp.eq.s32.totalorder %s13, 0
      %p123 = por %p121, %p122
      %p124 = scmp.ne.s32.totalorder %s113, %s116
      %p125 = scmp.eq.s32.totalorder %s18, 1
      %p126 = por %p124, %p125
      %p127 = scmp.ne.s32.totalorder %s116, %s117
      %p128 = scmp.eq.s32.totalorder %s18, 0
      %p129 = por %p127, %p128
      %p130 = scmp.ne.s32.totalorder %s116, %s117
      %p131 = scmp.eq.s32.totalorder %s19, 1
      %p132 = por %p130, %p131
      %p134 = scmp.ne.s32.totalorder %s117, %s133
      %p135 = scmp.eq.s32.totalorder %s19, 0
      %p136 = por %p134, %p135
      %s137 = ssub.s32 %s20, %s32
      %s138 = ssub.s32 %s21, %s28
      %s139 = sor.u32 %s137, %s138
      %p140 = scmp.eq.s32.totalorder %s139, 0
      %s142 = sadd.s32 %s141, 1
      %s143 = scalar_select %p140, %s141, %s142
      %p146 = pneg %p140
      %p147 = scmp.eq.s32.totalorder %s13, 1
      %p148 = por %p146, %p147
      %p149 = scmp.ne.s32.totalorder %s141, %s144
      %p150 = scmp.eq.s32.totalorder %s13, 0
      %p151 = por %p149, %p150
      %p152 = scmp.ne.s32.totalorder %s141, %s144
      %p153 = scmp.eq.s32.totalorder %s18, 1
      %p154 = por %p152, %p153
      %p155 = scmp.ne.s32.totalorder %s144, %s145
      %p156 = scmp.eq.s32.totalorder %s18, 0
      %p157 = por %p155, %p156
      %p158 = scmp.ne.s32.totalorder %s144, %s145
      %p159 = scmp.eq.s32.totalorder %s19, 1
      %p160 = por %p158, %p159
      %p162 = scmp.ne.s32.totalorder %s145, %s161
      %p163 = scmp.eq.s32.totalorder %s19, 0
      %p164 = por %p162, %p163
      %p165 = scmp.le.s32.totalorder 1, %s13
      %p166 = scmp.lt.s32.totalorder %s13, 3
      %p167 = pnand %p165, %p166
      %p168 = pneg %p167
      // Predicated region
      $region9: #{perm_equi2_mean.1} parent=5 // pred_check
        _
      $region10: #{perm_equi2_mean.1} parent=5 // pred_check_branch
        %170 = sbr.rel (%p167) target = $region12
      $region11: #{perm_equi2_mean.1} parent=5 // pred_region
        %s171 = ssub.s32 %s13, 1
        // Predicated region
        $region13: #{perm_equi2_mean.1} parent=11 // pred_check
          %p172 = pneg %p77
        $region14: #{perm_equi2_mean.1} parent=11 // pred_check_branch
          %174 = sbr.rel (%p172) target = $region16
        $region15: #{perm_equi2_mean.1} parent=11 // pred_region
          %p175 = scmp.lt.s32.totalorder %s23, 0
          %s176 = scalar_select %p175, %s23, 0
          %s177 = smul.addr %s176, 8
          %s178 = scalar_lea.vmem %s1, %s177
        $region16: #{perm_equi2_mean.1} parent=11 // pred_fallthru
          _
        // Predicated region
        $region17: #{perm_equi2_mean.1} parent=11 // pred_check
          %p179 = pneg %p103
        $region18: #{perm_equi2_mean.1} parent=11 // pred_check_branch
          %181 = sbr.rel (%p179) target = $region20
        $region19: #{perm_equi2_mean.1} parent=11 // pred_region
          %p182 = scmp.lt.s32.totalorder %s23, 0
          %s183 = scalar_select %p182, %s23, 0
          %s184 = scalar_lea.vmem %s2, %s183
        $region20: #{perm_equi2_mean.1} parent=11 // pred_fallthru
          _
        // Predicated region
        $region21: #{perm_equi2_mean.1} parent=11 // pred_check
          %p185 = pneg %p129
        $region22: #{perm_equi2_mean.1} parent=11 // pred_check_branch
          %187 = sbr.rel (%p185) target = $region24
        $region23: #{perm_equi2_mean.1} parent=11 // pred_region
          %p188 = scmp.lt.s32.totalorder %s23, 0
          %s189 = scalar_select %p188, %s23, 0
          %s190 = smul.addr %s189, 8
          %s191 = scalar_lea.vmem %s3, %s190
        $region24: #{perm_equi2_mean.1} parent=11 // pred_fallthru
          _
      $region12: #{perm_equi2_mean.1} parent=5 // pred_fallthru
        _
      %p192 = scmp.lt.s32.totalorder %s13, 2
      // Predicated region
      $region25: #{perm_equi2_mean.1} parent=5 // pred_check
        %p193 = pneg %p192
      $region26: #{perm_equi2_mean.1} parent=5 // pred_check_branch
        %195 = sbr.rel (%p193) target = $region28
      $region27: #{perm_equi2_mean.1} parent=5 // pred_region
        // Predicated region
        $region29: #{perm_equi2_mean.1} parent=27 // pred_check
          %p196 = pneg %p45
        $region30: #{perm_equi2_mean.1} parent=27 // pred_check_branch
          %198 = sbr.rel (%p196) target = $region32
        $region31: #{perm_equi2_mean.1} parent=27 // pred_region
          %p199 = scmp.lt.s32.totalorder %s20, 1
          %s200 = scalar_select %p199, %s20, 1
          %s201 = smul.addr %s200, 2
          %s202 = smul.addr %s201, 8
          %s203 = scalar_lea.vmem %s0, %s202
        $region32: #{perm_equi2_mean.1} parent=27 // pred_fallthru
          _
      $region28: #{perm_equi2_mean.1} parent=5 // pred_fallthru
        _
      %p204 = scmp.le.s32.totalorder 1, %s13
      %p205 = scmp.lt.s32.totalorder %s13, 3
      %p206 = pnand %p204, %p205
      %p207 = pneg %p206
      // Predicated region
      $region33: #{perm_equi2_mean.1} parent=5 // pred_check
        _
      $region34: #{perm_equi2_mean.1} parent=5 // pred_check_branch
        %209 = sbr.rel (%p206) target = $region36
      $region35: #{perm_equi2_mean.1} parent=5 // pred_region
        %s210 = ssub.s32 %s13, 1
        %p211 = scmp.lt.s32.totalorder %s22, 1
        %s212 = scalar_select %p211, %s22, 1
        %s213 = smul.addr %s212, 2
        %s214 = smul.addr %s213, 8
        %s215 = scalar_lea.vmem %s0, %s214
        %p216 = pneg %p51
        %p217 = pneg %p48
        %p218 = scmp.lt.s32.totalorder %s23, 0
        %s219 = scalar_select %p218, %s23, 0
        %s220 = smul.addr %s219, 8
        %s221 = scalar_lea.vmem %s1, %s220
        %p222 = pneg %p77
        %p223 = pneg %p74
        %p224 = scmp.lt.s32.totalorder %s23, 0
        %s225 = scalar_select %p224, %s23, 0
        %s226 = scalar_lea.vmem %s2, %s225
        %p227 = pneg %p103
        %p228 = pneg %p100
        %p229 = scmp.lt.s32.totalorder %s23, 0
        %s230 = scalar_select %p229, %s23, 0
        %s231 = smul.addr %s230, 8
        %s232 = scalar_lea.vmem %s3, %s231
        %p233 = pneg %p129
        %p234 = pneg %p126
        %p235 = pneg %p157
        %p236 = pneg %p154
        %s237 = sand.u32 %s144, 1
        %s238 = scalar_lea.sflag [#allocation4], %s237
        %s239 = sand.u32 %s144, 1
        %s240 = smul.addr %s239, 16
        %s241 = scalar_lea.vmem [#allocation3], %s240
        %p242 = scmp.lt.s32.totalorder %s22, 1
        %s243 = scalar_select %p242, %s22, 1
        %s244 = smul.addr %s243, 2
        %s245 = smul.addr %s244, 8
        %s246 = scalar_lea.vmem %s0, %s245
        %p247 = scmp.lt.s32.totalorder %s23, 0
        %s248 = scalar_select %p247, %s23, 0
        %s249 = smul.addr %s248, 8
        %s250 = scalar_lea.vmem %s1, %s249
        %p251 = scmp.lt.s32.totalorder %s23, 0
        %s252 = scalar_select %p251, %s23, 0
        %s253 = scalar_lea.vmem %s2, %s252
        %p254 = scmp.lt.s32.totalorder %s23, 0
        %s255 = scalar_select %p254, %s23, 0
        %s256 = smul.addr %s255, 8
        %s257 = scalar_lea.vmem %s3, %s256
        %p258 = scmp.eq.s32.totalorder %s23, 0
        // Predicated region
        $region37: #{perm_equi2_mean.1} parent=35 // pred_check
          %p259 = pneg %p258
        $region38: #{perm_equi2_mean.1} parent=35 // pred_check_branch
          %261 = sbr.rel (%p259) target = $region40
        $region39: #{perm_equi2_mean.1} parent=35 // pred_region
          %v262 = vld [vmem:[%s246] sm:$0xff]
          %v263 = vld [vmem:[%s246 + $0x8] sm:$0xff]
          %vm264 = vcmask 130048
          %v265 = vsel %vm264, %v262, 0.0
          %v266 = vsel %vm264, %v263, 0.0
          %v267 = vadd.f32 %v265, %v266
          %v268 = vrot.slane %v267, 4
          %v269 = vadd.f32 %v267, %v268
          %v270 = vrot.slane %v269, 2
          %v271 = vadd.f32 %v269, %v270
          %v272 = vrot.slane %v271, 1
          %v273 = vadd.f32 %v271, %v272
          %v274 = vmul.f32 %v273, 0.0625
          %vm275 = vcmask 122880
          %276 = vst.msk [vmem:[#allocation2] sm:$0x1] %vm275, %v274
        $region40: #{perm_equi2_mean.1} parent=35 // pred_fallthru
          _
        %v277 = vld [vmem:[%s246] sm:$0xff]
        %v278 = vld [vmem:[%s246 + $0x8] sm:$0xff]
        %v279 = vld [vmem:[%s250] sm:$0xff]
        %v280 = vld [vmem:[%s250 + $0x8] sm:$0xff]
        %vm281 = vcmask 130048
        %v283 = vsel %vm281, %v277, 0
        %v286 = vsel %vm281, %v278, 0
        %288 = vmatprep.subr.mxu0 0.0
        %289 = vmatpush1.msra.mxu0 %v279
        %290 = vmatprep.subr.mxu0 0.0
        %291 = vmatpush1.msra.mxu0 %v280
        %292 = vmatprep.subr.mxu0 0.0
        %293 = vmatpush1.msra.mxu0 0.0
        %294 = vmatprep.subr.mxu0 0.0
        %295 = vmatpush1.msra.mxu0 0.0
        %296 = vmatprep.subr.mxu0 0.0
        %297 = vmatpush1.msra.mxu0 0.0
        %298 = vmatprep.subr.mxu0 0.0
        %299 = vmatpush1.msra.mxu0 0.0
        %300 = vmatprep.subr.mxu0 0.0
        %301 = vmatpush1.msra.mxu0 0.0
        %302 = vmatprep.subr.mxu0 0.0
        %303 = vmatpush1.msra.mxu0 0.0
        %304 = vmatprep.subr.mxu0 0.0
        %305 = vmatpush1.msra.mxu0 0.0
        %306 = vmatprep.subr.mxu0 0.0
        %307 = vmatpush1.msra.mxu0 0.0
        %308 = vmatprep.subr.mxu0 0.0
        %309 = vmatpush1.msra.mxu0 0.0
        %310 = vmatprep.subr.mxu0 0.0
        %311 = vmatpush1.msra.mxu0 0.0
        %312 = vmatprep.subr.mxu0 0.0
        %313 = vmatpush1.msra.mxu0 0.0
        %314 = vmatprep.subr.mxu0 0.0
        %315 = vmatpush1.msra.mxu0 0.0
        %316 = vmatprep.subr.mxu0 0.0
        %317 = vmatpush1.msra.mxu0 0.0
        %318 = vmatprep.subr.mxu0 0.0
        %319 = vmatpush1.msra.mxu0 0.0
        %320 = vmatprep.subr.mxu0 0.0
        %321 = vmatpush1.msra.mxu0 0.0
        %322 = vmatprep.subr.mxu0 0.0
        %323 = vmatpush1.msra.mxu0 0.0
        %324 = vmatprep.subr.mxu0 0.0
        %325 = vmatpush1.msra.mxu0 0.0
        %326 = vmatprep.subr.mxu0 0.0
        %327 = vmatpush1.msra.mxu0 0.0
        %328 = vmatprep.subr.mxu0 0.0
        %329 = vmatpush1.msra.mxu0 0.0
        %330 = vmatprep.subr.mxu0 0.0
        %331 = vmatpush1.msra.mxu0 0.0
        %332 = vmatprep.subr.mxu0 0.0
        %333 = vmatpush1.msra.mxu0 0.0
        %334 = vmatprep.subr.mxu0 0.0
        %335 = vmatpush1.msra.mxu0 0.0
        %336 = vmatprep.subr.mxu0 0.0
        %337 = vmatpush1.msra.mxu0 0.0
        %338 = vmatprep.subr.mxu0 0.0
        %339 = vmatpush1.msra.mxu0 0.0
        %340 = vmatprep.subr.mxu0 0.0
        %341 = vmatpush1.msra.mxu0 0.0
        %342 = vmatprep.subr.mxu0 0.0
        %343 = vmatpush1.msra.mxu0 0.0
        %344 = vmatprep.subr.mxu0 0.0
        %345 = vmatpush1.msra.mxu0 0.0
        %346 = vmatprep.subr.mxu0 0.0
        %347 = vmatpush1.msra.mxu0 0.0
        %348 = vmatprep.subr.mxu0 0.0
        %349 = vmatpush1.msra.mxu0 0.0
        %350 = vmatprep.subr.mxu0 0.0
        %351 = vmatpush1.msra.mxu0 0.0
        %352 = vmatprep.mubr.f32.mxu0 0.0
        %353 = vmatmul.mubr.f32.gmra.mrb[0].mxu0 %v283
        %v354 = vpop.f32.mrb[0].mxu0
        %v355 = vadd.f32 0.0, %v354
        %v356 = vpop.f32.mrb[0].mxu0
        %357 = vmatprep.mubr.f32.mxu0 0.0
        %358 = vmatmul.mubr.f32.gmra.mrb[0].mxu0 %v286
        %v359 = vpop.f32.mrb[0].mxu0
        %v360 = vadd.f32 0.0, %v359
        %v361 = vpop.f32.mrb[0].mxu0
        %362 = vdwg.mxu0
        %v363 = vld [vmem:[#allocation2] sm:$0x1]
        %v364 = vld [vmem:[%s257] sm:$0xff]
        %v365 = vld [vmem:[%s257 + $0x8] sm:$0xff]
        %v367 = vsel %vm281, %v363, 0
        %369 = vmatprep.subr.mxu0 0.0
        %370 = vmatpush1.msra.mxu0 %v364
        %371 = vmatprep.subr.mxu0 0.0
        %372 = vmatpush1.msra.mxu0 %v365
        %373 = vmatprep.subr.mxu0 0.0
        %374 = vmatpush1.msra.mxu0 0.0
        %375 = vmatprep.subr.mxu0 0.0
        %376 = vmatpush1.msra.mxu0 0.0
        %377 = vmatprep.subr.mxu0 0.0
        %378 = vmatpush1.msra.mxu0 0.0
        %379 = vmatprep.subr.mxu0 0.0
        %380 = vmatpush1.msra.mxu0 0.0
        %381 = vmatprep.subr.mxu0 0.0
        %382 = vmatpush1.msra.mxu0 0.0
        %383 = vmatprep.subr.mxu0 0.0
        %384 = vmatpush1.msra.mxu0 0.0
        %385 = vmatprep.subr.mxu0 0.0
        %386 = vmatpush1.msra.mxu0 0.0
        %387 = vmatprep.subr.mxu0 0.0
        %388 = vmatpush1.msra.mxu0 0.0
        %389 = vmatprep.subr.mxu0 0.0
        %390 = vmatpush1.msra.mxu0 0.0
        %391 = vmatprep.subr.mxu0 0.0
        %392 = vmatpush1.msra.mxu0 0.0
        %393 = vmatprep.subr.mxu0 0.0
        %394 = vmatpush1.msra.mxu0 0.0
        %395 = vmatprep.subr.mxu0 0.0
        %396 = vmatpush1.msra.mxu0 0.0
        %397 = vmatprep.subr.mxu0 0.0
        %398 = vmatpush1.msra.mxu0 0.0
        %399 = vmatprep.subr.mxu0 0.0
        %400 = vmatpush1.msra.mxu0 0.0
        %401 = vmatprep.subr.mxu0 0.0
        %402 = vmatpush1.msra.mxu0 0.0
        %403 = vmatprep.subr.mxu0 0.0
        %404 = vmatpush1.msra.mxu0 0.0
        %405 = vmatprep.subr.mxu0 0.0
        %406 = vmatpush1.msra.mxu0 0.0
        %407 = vmatprep.subr.mxu0 0.0
        %408 = vmatpush1.msra.mxu0 0.0
        %409 = vmatprep.subr.mxu0 0.0
        %410 = vmatpush1.msra.mxu0 0.0
        %411 = vmatprep.subr.mxu0 0.0
        %412 = vmatpush1.msra.mxu0 0.0
        %413 = vmatprep.subr.mxu0 0.0
        %414 = vmatpush1.msra.mxu0 0.0
        %415 = vmatprep.subr.mxu0 0.0
        %416 = vmatpush1.msra.mxu0 0.0
        %417 = vmatprep.subr.mxu0 0.0
        %418 = vmatpush1.msra.mxu0 0.0
        %419 = vmatprep.subr.mxu0 0.0
        %420 = vmatpush1.msra.mxu0 0.0
        %421 = vmatprep.subr.mxu0 0.0
        %422 = vmatpush1.msra.mxu0 0.0
        %423 = vmatprep.subr.mxu0 0.0
        %424 = vmatpush1.msra.mxu0 0.0
        %425 = vmatprep.subr.mxu0 0.0
        %426 = vmatpush1.msra.mxu0 0.0
        %427 = vmatprep.subr.mxu0 0.0
        %428 = vmatpush1.msra.mxu0 0.0
        %429 = vmatprep.subr.mxu0 0.0
        %430 = vmatpush1.msra.mxu0 0.0
        %431 = vmatprep.subr.mxu0 0.0
        %432 = vmatpush1.msra.mxu0 0.0
        %433 = vmatprep.mubr.f32.mxu0 0.0
        %434 = vmatmul.mubr.f32.gmra.mrb[0].mxu0 %v367
        %v435 = vpop.f32.mrb[0].mxu0
        %v436 = vadd.f32 0.0, %v435
        %v437 = vpop.f32.mrb[0].mxu0
        %438 = vdwg.mxu0
        %v439 = vld [vmem:[%s253] sm:$0x1]
        %v441 = vlaneseq
        %v442 = vshrl.u32 %v441, 7
        %v443 = vsub.s32 0, %v442
        %v444 = vrot.slane %v439, %v443
        %v446 = vadd.f32 %v355, %v444
        %v447 = vadd.f32 %v360, %v444
        %v448 = vlaneseq
        %v449 = vshrl.u32 %v448, 7
        %v450 = vsub.s32 0, %v449
        %v451 = vrot.slane %v436, %v450
        %v452 = vsub.f32 %v446, %v451
        %v453 = vsub.f32 %v447, %v451
        %454 = vst [vmem:[%s241] sm:$0xff] %v452
        %455 = vst [vmem:[%s241 + $0x8] sm:$0xff] %v453
        %s456 = sand.u32 %s144, 1
        %s457 = scalar_lea.sflag [#allocation4], %s456
        %s458 = sand.u32 %s144, 1
        %s459 = smul.addr %s458, 16
        %s460 = scalar_lea.vmem [#allocation3], %s459
        // Predicated region
        $region41: #{perm_equi2_mean.1} parent=35 // pred_check
          %p461 = pneg %p154
        $region42: #{perm_equi2_mean.1} parent=35 // pred_check_branch
          %463 = sbr.rel (%p461) target = $region44
        $region43: #{perm_equi2_mean.1} parent=35 // pred_region
          %s465 = ssub.s32 256, 256
          %466 = vsyncadd %s457, %s465
          %s467 = smul.addr %s22, 2
          %s468 = sadd.s32 %s23, %s467
          %s469 = smul.addr %s468, 128
          %s470 = scalar_lea.hbm %s4, %s469
          %s471 = sshll.u32 %s460, 4
          %s472 = int_to_ptr.vmem [resolvable:$true] %s471
          %477 = dma.vmem_to_hbm [thread:$0]  %s472, 256, %s470, %s457, 128, 128, 8
        $region44: #{perm_equi2_mean.1} parent=35 // pred_fallthru
          _
      $region36: #{perm_equi2_mean.1} parent=5 // pred_fallthru
        _
      %p478 = scmp.le.s32.totalorder 2, %s13
      // Predicated region
      $region45: #{perm_equi2_mean.1} parent=5 // pred_check
        %p479 = pneg %p478
      $region46: #{perm_equi2_mean.1} parent=5 // pred_check_branch
        %481 = sbr.rel (%p479) target = $region48
      $region47: #{perm_equi2_mean.1} parent=5 // pred_region
        %s482 = ssub.s32 %s13, 2
        // Predicated region
        $region49: #{perm_equi2_mean.1} parent=47 // pred_check
          %p483 = pneg %p160
        $region50: #{perm_equi2_mean.1} parent=47 // pred_check_branch
          %485 = sbr.rel (%p483) target = $region52
        $region51: #{perm_equi2_mean.1} parent=47 // pred_region
          %s486 = sand.u32 %s145, 1
          %s487 = scalar_lea.sflag [#allocation4], %s486
          %s488 = sand.u32 %s145, 1
          %s489 = smul.addr %s488, 16
          %s490 = scalar_lea.vmem [#allocation3], %s489
          %491 = dma.done %s487, 256
        $region52: #{perm_equi2_mean.1} parent=47 // pred_fallthru
          _
      $region48: #{perm_equi2_mean.1} parent=5 // pred_fallthru
        _
    $region6: #{perm_equi2_mean.1} parent=1 // loop_footer
      %s17 = sadd.s32 1, %s13
    $region7: #{perm_equi2_mean.1} parent=1 // loop_footer_branch
      %12 = sbr.rel target = $region3
    $region8: #{perm_equi2_mean.1} parent=1 // loop_exit
      _
    %492 = vsyncpa [#allocation4], 1
    %s493 = scalar_lea.sflag [#allocation4], 1
    %494 = vsyncpa %s493, 1

</llo_original>
